<compile_context>
chip_gen: v6e
topology: v6e:2x2x1
jax: 0.10.0
libtpu: 0.0.40
codegen_flags: <defaults>
</compile_context>

<pallas_src>
import jax
import jax.numpy as jnp
from jax import lax
from jax.experimental import pallas as pl
from jax.experimental.pallas import tpu as pltpu

EPS = 1e-8


def stnorm_kernel(x_ref, wm_ref, ws_ref, wg_ref, bg_ref, o_ref):
    # x block: (Bt, D, T);  weights: (D, D);  bias: (1, D)
    x = x_ref[...].astype(jnp.float32)                      # (Bt, D, T)
    wm = wm_ref[...].astype(jnp.float32)                    # mean_layer.weight
    ws = ws_ref[...].astype(jnp.float32)                    # scaling_layer.weight
    wg = wg_ref[...].astype(jnp.float32)                    # gating_layer.weight
    bg = bg_ref[...].astype(jnp.float32)                    # (1, D)

    def linear(v, w):
        # v: (Bt, D), w: (D, D)  ->  v @ w.T  (PyTorch nn.Linear orientation)
        return lax.dot_general(v, w, (((1,), (1,)), ((), ())),
                               preferred_element_type=jnp.float32)

    # avg = mean(x, dim=2); adaptive_avg = mean_layer(avg)
    avg = jnp.mean(x, axis=2)                               # (Bt, D)
    adaptive_avg = linear(avg, wm)                          # (Bt, D)
    xc = x - adaptive_avg[:, :, None]                       # (Bt, D, T)

    # std = sqrt(mean(xc^2, dim=2) + eps); adaptive_std = scaling_layer(std)
    std = jnp.sqrt(jnp.mean(xc * xc, axis=2) + EPS)         # (Bt, D)
    adaptive_std = linear(std, ws)                          # (Bt, D)
    adaptive_std = jnp.where(adaptive_std <= EPS, jnp.float32(1.0), adaptive_std)
    inv_std = pl.reciprocal(adaptive_std, approx=False)     # exact; (Bt, D)

    # mean(x_normalized, dim=2) == (avg - adaptive_avg) * inv_std
    # (exact: adaptive_avg and inv_std are constant along T).
    avg2 = (avg - adaptive_avg) * inv_std                   # (Bt, D)
    gate = jax.nn.sigmoid(linear(avg2, wg) + bg)            # (Bt, D)

    # Fused normalize + gate: a single broadcast multiply over the big tensor.
    scale = inv_std * gate                                  # (Bt, D)
    o_ref[...] = (xc * scale[:, :, None]).astype(o_ref.dtype)


def stnorm_pallas(x, w_mean, w_scale, w_gate, b_gate,
                  *, batch_tile=None, vmem_limit_bytes=48 * 1024 * 1024):
    B, D, T = x.shape
    if batch_tile is None:
        # Budget the big (Bt, D, T) in/out tiles (double-buffered input +
        # output) at ~8 MiB of VMEM per pipeline stage, and keep >=2 grid
        # steps so v7x's two TensorCores both get work when B >= 2.
        bytes_per_row = D * T * x.dtype.itemsize
        bt = max(1, (8 * 1024 * 1024) // max(1, 4 * bytes_per_row))
        if B >= 2:
            bt = min(bt, pl.cdiv(B, 2))
        batch_tile = int(min(B, bt))
    bt = int(batch_tile)
    bg = b_gate.reshape(1, D)

    return pl.pallas_call(
        stnorm_kernel,
        out_shape=jax.ShapeDtypeStruct((B, D, T), x.dtype),
        grid_spec=pltpu.PrefetchScalarGridSpec(
            num_scalar_prefetch=0,
            grid=(pl.cdiv(B, bt),),
            in_specs=[
                pl.BlockSpec((bt, D, T), lambda b: (b, 0, 0)),
                pl.BlockSpec((D, D), lambda b: (0, 0)),
                pl.BlockSpec((D, D), lambda b: (0, 0)),
                pl.BlockSpec((D, D), lambda b: (0, 0)),
                pl.BlockSpec((1, D), lambda b: (0, 0)),
            ],
            out_specs=pl.BlockSpec((bt, D, T), lambda b: (b, 0, 0)),
        ),
        compiler_params=pltpu.CompilerParams(
            dimension_semantics=("parallel",),
            vmem_limit_bytes=vmem_limit_bytes),
    )(x, w_mean, w_scale, w_gate, bg)


def stnorm_ref(x, w_mean, w_scale, w_gate, b_gate):
    # Pure-JAX reference mirroring the PyTorch forward, for verification.
    avg = jnp.mean(x, axis=2)
    adaptive_avg = avg @ w_mean.T
    x = x - adaptive_avg[..., None]
    std = jnp.sqrt(jnp.mean(x * x, axis=2) + EPS)
    adaptive_std = std @ w_scale.T
    adaptive_std = jnp.where(adaptive_std <= EPS, 1.0, adaptive_std)
    x = x / adaptive_std[..., None]
    avg = jnp.mean(x, axis=2)
    gate = jax.nn.sigmoid(avg @ w_gate.T + b_gate)
    return x * gate[..., None]


if __name__ == "__main__":
    B, D, T = 8, 32, 128   # batch, input_dim, sequence length (T lane-dense)

    key = jax.random.PRNGKey(0)
    kx, kw, kb = jax.random.split(key, 3)

    x = jax.random.normal(kx, (B, D, T), dtype=jnp.float32)

    # Deterministic parameter init matching the module's __init__:
    # mean_layer / scaling_layer weights are identity; gating_layer follows
    # the standard nn.Linear uniform(-1/sqrt(D), 1/sqrt(D)) init.
    w_mean = jnp.eye(D, dtype=jnp.float32)
    w_scale = jnp.eye(D, dtype=jnp.float32)
    bound = 1.0 / jnp.sqrt(jnp.float32(D))
    w_gate = jax.random.uniform(kw, (D, D), jnp.float32, -bound, bound)
    b_gate = jax.random.uniform(kb, (D,), jnp.float32, -bound, bound)

    out = stnorm_pallas(x, w_mean, w_scale, w_gate, b_gate)   # default: Bt=4, 2 grid steps
    out = jax.block_until_ready(out)

    ref = stnorm_ref(x, w_mean, w_scale, w_gate, b_gate)
    assert out.shape == (B, D, T)
    assert jnp.allclose(out, ref, atol=1e-5, rtol=1e-5), "mismatch vs reference"

    print("KERNEL_OK")
</pallas_src>

<mosaic_0001>
module attributes {stable_mosaic.version = 11 : i64} {
  func.func @stnorm_kernel(%arg0: i32, %arg1: memref<4x32x128xf32, #tpu.memory_space<vmem>>, %arg2: memref<32x32xf32, #tpu.memory_space<vmem>>, %arg3: memref<32x32xf32, #tpu.memory_space<vmem>>, %arg4: memref<32x32xf32, #tpu.memory_space<vmem>>, %arg5: memref<1x32xf32, #tpu.memory_space<vmem>>, %arg6: memref<4x32x128xf32, #tpu.memory_space<vmem>>) attributes {dimension_semantics = [#tpu.dimension_semantics<parallel>], iteration_bounds = array<i64: 2>, scalar_prefetch = 0 : i64, scratch_operands = 0 : i64, tpu.core_type = #tpu.core_type<tc>, window_params = [{transform_indices = @transform_0, window_bounds = array<i64: 4, 32, 128>}, {pipeline_mode = #tpu.pipeline_mode<synchronous>, transform_indices = @transform_1, window_bounds = array<i64: 32, 32>}, {pipeline_mode = #tpu.pipeline_mode<synchronous>, transform_indices = @transform_2, window_bounds = array<i64: 32, 32>}, {pipeline_mode = #tpu.pipeline_mode<synchronous>, transform_indices = @transform_3, window_bounds = array<i64: 32, 32>}, {pipeline_mode = #tpu.pipeline_mode<synchronous>, transform_indices = @transform_4, window_bounds = array<i64: 1, 32>}, {transform_indices = @transform_5, window_bounds = array<i64: 4, 32, 128>}]} {
    %c0 = arith.constant 0 : index
    %c0_0 = arith.constant 0 : index
    %c0_1 = arith.constant 0 : index
    %0 = vector.load %arg1[%c0, %c0_0, %c0_1] : memref<4x32x128xf32, #tpu.memory_space<vmem>>, vector<4x32x128xf32>
    %c0_2 = arith.constant 0 : index
    %c0_3 = arith.constant 0 : index
    %1 = vector.load %arg2[%c0_2, %c0_3] : memref<32x32xf32, #tpu.memory_space<vmem>>, vector<32x32xf32>
    %c0_4 = arith.constant 0 : index
    %c0_5 = arith.constant 0 : index
    %2 = vector.load %arg3[%c0_4, %c0_5] : memref<32x32xf32, #tpu.memory_space<vmem>>, vector<32x32xf32>
    %c0_6 = arith.constant 0 : index
    %c0_7 = arith.constant 0 : index
    %3 = vector.load %arg4[%c0_6, %c0_7] : memref<32x32xf32, #tpu.memory_space<vmem>>, vector<32x32xf32>
    %c0_8 = arith.constant 0 : index
    %c0_9 = arith.constant 0 : index
    %4 = vector.load %arg5[%c0_8, %c0_9] : memref<1x32xf32, #tpu.memory_space<vmem>>, vector<1x32xf32>
    %cst = arith.constant dense<0.000000e+00> : vector<4x32xf32>
    %5 = vector.multi_reduction <add>, %0, %cst [2] : vector<4x32x128xf32> to vector<4x32xf32>
    %cst_10 = arith.constant 1.280000e+02 : f32
    %6 = vector.broadcast %cst_10 : f32 to vector<4x32xf32>
    %7 = arith.divf %5, %6 : vector<4x32xf32>
    %cst_11 = arith.constant dense<0.000000e+00> : vector<4x32xf32>
    %8 = tpu.matmul %7, %1, %cst_11 {dimension_numbers = #tpu.dot_dimension_numbers<[1], [1], [0], [0], [0, 0, 1, 0], [], []>} : vector<4x32xf32>, vector<32x32xf32>, vector<4x32xf32> -> vector<4x32xf32>
    %9 = vector.shape_cast %8 : vector<4x32xf32> to vector<4x32x1xf32>
    %10 = vector.broadcast %9 : vector<4x32x1xf32> to vector<4x32x128xf32>
    %11 = arith.subf %0, %10 : vector<4x32x128xf32>
    %12 = arith.mulf %11, %11 : vector<4x32x128xf32>
    %cst_12 = arith.constant dense<0.000000e+00> : vector<4x32xf32>
    %13 = vector.multi_reduction <add>, %12, %cst_12 [2] : vector<4x32x128xf32> to vector<4x32xf32>
    %cst_13 = arith.constant 1.280000e+02 : f32
    %14 = vector.broadcast %cst_13 : f32 to vector<4x32xf32>
    %15 = arith.divf %13, %14 : vector<4x32xf32>
    %cst_14 = arith.constant 9.99999993E-9 : f32
    %16 = vector.broadcast %cst_14 : f32 to vector<4x32xf32>
    %17 = arith.addf %15, %16 : vector<4x32xf32>
    %18 = math.sqrt %17 : vector<4x32xf32>
    %cst_15 = arith.constant dense<0.000000e+00> : vector<4x32xf32>
    %19 = tpu.matmul %18, %2, %cst_15 {dimension_numbers = #tpu.dot_dimension_numbers<[1], [1], [0], [0], [0, 0, 1, 0], [], []>} : vector<4x32xf32>, vector<32x32xf32>, vector<4x32xf32> -> vector<4x32xf32>
    %cst_16 = arith.constant 9.99999993E-9 : f32
    %20 = vector.broadcast %cst_16 : f32 to vector<4x32xf32>
    %21 = arith.cmpf ole, %19, %20 : vector<4x32xf32>
    %cst_17 = arith.constant 1.000000e+00 : f32
    %22 = vector.broadcast %cst_17 : f32 to vector<4x32xf32>
    %23 = arith.select %21, %22, %19 : vector<4x32xi1>, vector<4x32xf32>
    %24 = tpu.reciprocal %23 : vector<4x32xf32> -> vector<4x32xf32>
    %25 = arith.subf %7, %8 : vector<4x32xf32>
    %26 = arith.mulf %25, %24 : vector<4x32xf32>
    %cst_18 = arith.constant dense<0.000000e+00> : vector<4x32xf32>
    %27 = tpu.matmul %26, %3, %cst_18 {dimension_numbers = #tpu.dot_dimension_numbers<[1], [1], [0], [0], [0, 0, 1, 0], [], []>} : vector<4x32xf32>, vector<32x32xf32>, vector<4x32xf32> -> vector<4x32xf32>
    %28 = vector.broadcast %4 : vector<1x32xf32> to vector<4x32xf32>
    %29 = arith.addf %27, %28 : vector<4x32xf32>
    %30 = arith.negf %29 : vector<4x32xf32>
    %31 = math.exp %30 : vector<4x32xf32>
    %cst_19 = arith.constant 1.000000e+00 : f32
    %32 = vector.broadcast %cst_19 : f32 to vector<4x32xf32>
    %33 = arith.addf %32, %31 : vector<4x32xf32>
    %34 = arith.divf %32, %33 : vector<4x32xf32>
    %35 = arith.mulf %24, %34 : vector<4x32xf32>
    %36 = vector.shape_cast %35 : vector<4x32xf32> to vector<4x32x1xf32>
    %37 = vector.broadcast %36 : vector<4x32x1xf32> to vector<4x32x128xf32>
    %38 = arith.mulf %11, %37 : vector<4x32x128xf32>
    %c0_20 = arith.constant 0 : index
    %c0_21 = arith.constant 0 : index
    %c0_22 = arith.constant 0 : index
    %39 = vector.load %arg6[%c0_20, %c0_21, %c0_22] : memref<4x32x128xf32, #tpu.memory_space<vmem>>, vector<4x32x128xf32>
    tpu.vector_store %arg6[%c0_20, %c0_21, %c0_22], %38 {strides = array<i32>} : memref<4x32x128xf32, #tpu.memory_space<vmem>>, vector<4x32x128xf32>,
    return
  }
  func.func @transform_0(%arg0: i32) -> (i32, i32, i32) {
    %c0_i32 = arith.constant 0 : i32
    %c0_i32_0 = arith.constant 0 : i32
    %c0_i32_1 = arith.constant 0 : i32
    return %arg0, %c0_i32, %c0_i32_0 : i32, i32, i32
  }
  func.func @transform_1(%arg0: i32) -> (i32, i32) {
    %c0_i32 = arith.constant 0 : i32
    %c0_i32_0 = arith.constant 0 : i32
    %c0_i32_1 = arith.constant 0 : i32
    return %c0_i32, %c0_i32_0 : i32, i32
  }
  func.func @transform_2(%arg0: i32) -> (i32, i32) {
    %c0_i32 = arith.constant 0 : i32
    %c0_i32_0 = arith.constant 0 : i32
    %c0_i32_1 = arith.constant 0 : i32
    return %c0_i32, %c0_i32_0 : i32, i32
  }
  func.func @transform_3(%arg0: i32) -> (i32, i32) {
    %c0_i32 = arith.constant 0 : i32
    %c0_i32_0 = arith.constant 0 : i32
    %c0_i32_1 = arith.constant 0 : i32
    return %c0_i32, %c0_i32_0 : i32, i32
  }
  func.func @transform_4(%arg0: i32) -> (i32, i32) {
    %c0_i32 = arith.constant 0 : i32
    %c0_i32_0 = arith.constant 0 : i32
    %c0_i32_1 = arith.constant 0 : i32
    return %c0_i32, %c0_i32_0 : i32, i32
  }
  func.func @transform_5(%arg0: i32) -> (i32, i32, i32) {
    %c0_i32 = arith.constant 0 : i32
    %c0_i32_0 = arith.constant 0 : i32
    %c0_i32_1 = arith.constant 0 : i32
    return %arg0, %c0_i32, %c0_i32_0 : i32, i32, i32
  }
}

</mosaic_0001>

<llo_original>
// kernel: tpu_custom_call.1
$region0: #{tpu_custom_call.1}
  #allocation0 [shape = 'u32[]', space=smem, size = 0x4, offset = 0x4, fixed_abs, tag = 'smem constant byte address 0x4 - core index']
  #allocation1 [shape = 'u32[144,128]{1,0:T(1,128)}', space=vmem, size = 0x12000, scoped, tag = 'internal scratch']
  %s0 = inlined_call_operand.hbm [shape: f32[8,32,128], index: 0, kind: input, shape index: {}]
  %s1 = inlined_call_operand.hbm [shape: f32[32,32], index: 1, kind: input, shape index: {}]
  %s2 = inlined_call_operand.hbm [shape: f32[32,32], index: 2, kind: input, shape index: {}]
  %s3 = inlined_call_operand.hbm [shape: f32[32,32], index: 3, kind: input, shape index: {}]
  %s4 = inlined_call_operand.vmem [shape: f32[1,32], index: 4, kind: input, shape index: {}]
  %s5 = inlined_call_operand.hbm [shape: f32[8,32,128], index: 5, kind: output, shape index: {}]
  %s6 = sld [smem:[#allocation0]]
  $region69: #{tpu_custom_call.1} parent=0
    _
  %s8 = ssub.s32 1, %s6
  %s9 = scalar_select 0, %s8, %s6
  $region1: #{tpu_custom_call.1} parent=0
    #allocation2 [shape = 'u8[131072]{0}', space=vmem, size = 0x20000, scoped, tag = 'input window, operand 0']
    #allocation3 [shape = 's32[2]{0}', space=sflag, size = 0x8, scoped, tag = 'scoped memory for tpu_custom_call.1']
    #allocation4 [shape = 's32[2]{0}', space=sflag, size = 0x8, scoped, tag = 'scoped memory for tpu_custom_call.1']
    #allocation5 [shape = 'u8[16384]{0}', space=vmem, size = 0x4000, scoped, tag = 'input window, operand 1, single buffered']
    #allocation6 [shape = 's32[1]{0}', space=sflag, size = 0x4, scoped, tag = 'scoped memory for tpu_custom_call.1']
    #allocation7 [shape = 'u8[16384]{0}', space=vmem, size = 0x4000, scoped, tag = 'input window, operand 2, single buffered']
    #allocation8 [shape = 'u8[16384]{0}', space=vmem, size = 0x4000, scoped, tag = 'input window, operand 3, single buffered']
    #allocation9 [shape = 's32[1]{0}', space=sflag, size = 0x4, scoped, tag = 'scoped memory for tpu_custom_call.1']
    #allocation10 [shape = 'u8[131072]{0}', space=vmem, size = 0x20000, scoped, tag = 'output window, operand 0']
    %10 = vsyncpa [#allocation3], 0
    %s11 = scalar_lea.sflag [#allocation3], 1
    %12 = vsyncpa %s11, 0
    %13 = vsyncpa [#allocation6], 0
    %14 = vsyncpa [#allocation9], 0
    %15 = vsyncpa [#allocation4], 0
    %s16 = scalar_lea.sflag [#allocation4], 1
    %17 = vsyncpa %s16, 0
    loop: start=0, step=1, limit=4
    $region2: #{tpu_custom_call.1} parent=1 // loop_pre_header
      _
    $region3: #{tpu_custom_call.1} parent=1 // loop_header
      %s19 = sphi 0, %s23
      %p20 = scmp.ge.s32.totalorder %s19, 4
      %s29 = sphi 0, %s31
      %s32 = sphi 0, %s29
      %s33 = sphi 0, %s32
      %s49 = sphi 0, %s33
      %s53 = sphi 0, %s53
      %s55 = sphi 0, %s53
      %s56 = sphi 0, %s55
      %s70 = sphi 0, %s56
      %s74 = sphi 0, %s74
      %s76 = sphi 0, %s74
      %s77 = sphi 0, %s76
      %s91 = sphi 0, %s77
      %s95 = sphi 0, %s95
      %s97 = sphi 0, %s95
      %s98 = sphi 0, %s97
      %s112 = sphi 0, %s98
      %s116 = sphi 0, %s116
      %s118 = sphi 0, %s116
      %s119 = sphi 0, %s118
      %s133 = sphi 0, %s119
      %s139 = sphi 0, %s141
      %s142 = sphi 0, %s139
      %s143 = sphi 0, %s142
      %s159 = sphi 0, %s143
    $region4: #{tpu_custom_call.1} parent=1 // loop_header_branch
      %22 = sbr.rel (%p20) target = $region8
    $region5: #{tpu_custom_call.1} parent=1 // loop_body
      %s24 = ssub.s32 %s19, 1
      %s25 = ssub.s32 %s19, 2
      %s26 = sadd.s32 %s19, 1
      %s27 = ssub.s32 %s19, %s26
      %p28 = scmp.eq.s32.totalorder %s27, 0
      %s30 = sadd.s32 %s29, 1
      %s31 = scalar_select %p28, %s29, %s30
      %p34 = pneg %p28
      %p35 = scmp.eq.s32.totalorder %s19, 1
      %p36 = por %p34, %p35
      %p37 = scmp.ne.s32.totalorder %s29, %s32
      %p38 = scmp.eq.s32.totalorder %s19, 0
      %p39 = por %p37, %p38
      %p40 = scmp.ne.s32.totalorder %s29, %s32
      %p41 = scmp.eq.s32.totalorder %s24, 1
      %p42 = por %p40, %p41
      %p43 = scmp.ne.s32.totalorder %s32, %s33
      %p44 = scmp.eq.s32.totalorder %s24, 0
      %p45 = por %p43, %p44
      %p46 = scmp.ne.s32.totalorder %s32, %s33
      %p47 = scmp.eq.s32.totalorder %s25, 1
      %p48 = por %p46, %p47
      %p50 = scmp.ne.s32.totalorder %s33, %s49
      %p51 = scmp.eq.s32.totalorder %s25, 0
      %p52 = por %p50, %p51
      %s54 = sadd.s32 %s53, 1
      %p57 = scmp.eq.s32.totalorder %s19, 1
      %p58 = scmp.ne.s32.totalorder %s53, %s55
      %p59 = scmp.eq.s32.totalorder %s19, 0
      %p60 = por %p58, %p59
      %p61 = scmp.ne.s32.totalorder %s53, %s55
      %p62 = scmp.eq.s32.totalorder %s24, 1
      %p63 = por %p61, %p62
      %p64 = scmp.ne.s32.totalorder %s55, %s56
      %p65 = scmp.eq.s32.totalorder %s24, 0
      %p66 = por %p64, %p65
      %p67 = scmp.ne.s32.totalorder %s55, %s56
      %p68 = scmp.eq.s32.totalorder %s25, 1
      %p69 = por %p67, %p68
      %p71 = scmp.ne.s32.totalorder %s56, %s70
      %p72 = scmp.eq.s32.totalorder %s25, 0
      %p73 = por %p71, %p72
      %s75 = sadd.s32 %s74, 1
      %p78 = scmp.eq.s32.totalorder %s19, 1
      %p79 = scmp.ne.s32.totalorder %s74, %s76
      %p80 = scmp.eq.s32.totalorder %s19, 0
      %p81 = por %p79, %p80
      %p82 = scmp.ne.s32.totalorder %s74, %s76
      %p83 = scmp.eq.s32.totalorder %s24, 1
      %p84 = por %p82, %p83
      %p85 = scmp.ne.s32.totalorder %s76, %s77
      %p86 = scmp.eq.s32.totalorder %s24, 0
      %p87 = por %p85, %p86
      %p88 = scmp.ne.s32.totalorder %s76, %s77
      %p89 = scmp.eq.s32.totalorder %s25, 1
      %p90 = por %p88, %p89
      %p92 = scmp.ne.s32.totalorder %s77, %s91
      %p93 = scmp.eq.s32.totalorder %s25, 0
      %p94 = por %p92, %p93
      %s96 = sadd.s32 %s95, 1
      %p99 = scmp.eq.s32.totalorder %s19, 1
      %p100 = scmp.ne.s32.totalorder %s95, %s97
      %p101 = scmp.eq.s32.totalorder %s19, 0
      %p102 = por %p100, %p101
      %p103 = scmp.ne.s32.totalorder %s95, %s97
      %p104 = scmp.eq.s32.totalorder %s24, 1
      %p105 = por %p103, %p104
      %p106 = scmp.ne.s32.totalorder %s97, %s98
      %p107 = scmp.eq.s32.totalorder %s24, 0
      %p108 = por %p106, %p107
      %p109 = scmp.ne.s32.totalorder %s97, %s98
      %p110 = scmp.eq.s32.totalorder %s25, 1
      %p111 = por %p109, %p110
      %p113 = scmp.ne.s32.totalorder %s98, %s112
      %p114 = scmp.eq.s32.totalorder %s25, 0
      %p115 = por %p113, %p114
      %s117 = sadd.s32 %s116, 1
      %p120 = scmp.eq.s32.totalorder %s19, 1
      %p121 = scmp.ne.s32.totalorder %s116, %s118
      %p122 = scmp.eq.s32.totalorder %s19, 0
      %p123 = por %p121, %p122
      %p124 = scmp.ne.s32.totalorder %s116, %s118
      %p125 = scmp.eq.s32.totalorder %s24, 1
      %p126 = por %p124, %p125
      %p127 = scmp.ne.s32.totalorder %s118, %s119
      %p128 = scmp.eq.s32.totalorder %s24, 0
      %p129 = por %p127, %p128
      %p130 = scmp.ne.s32.totalorder %s118, %s119
      %p131 = scmp.eq.s32.totalorder %s25, 1
      %p132 = por %p130, %p131
      %p134 = scmp.ne.s32.totalorder %s119, %s133
      %p135 = scmp.eq.s32.totalorder %s25, 0
      %p136 = por %p134, %p135
      %s137 = ssub.s32 %s19, %s26
      %p138 = scmp.eq.s32.totalorder %s137, 0
      %s140 = sadd.s32 %s139, 1
      %s141 = scalar_select %p138, %s139, %s140
      %p144 = pneg %p138
      %p145 = scmp.eq.s32.totalorder %s19, 1
      %p146 = por %p144, %p145
      %p147 = scmp.ne.s32.totalorder %s139, %s142
      %p148 = scmp.eq.s32.totalorder %s19, 0
      %p149 = por %p147, %p148
      %p150 = scmp.ne.s32.totalorder %s139, %s142
      %p151 = scmp.eq.s32.totalorder %s24, 1
      %p152 = por %p150, %p151
      %p153 = scmp.ne.s32.totalorder %s142, %s143
      %p154 = scmp.eq.s32.totalorder %s24, 0
      %p155 = por %p153, %p154
      %p156 = scmp.ne.s32.totalorder %s142, %s143
      %p157 = scmp.eq.s32.totalorder %s25, 1
      %p158 = por %p156, %p157
      %p160 = scmp.ne.s32.totalorder %s143, %s159
      %p161 = scmp.eq.s32.totalorder %s25, 0
      %p162 = por %p160, %p161
      %p163 = scmp.le.s32.totalorder 1, %s19
      %p164 = scmp.lt.s32.totalorder %s19, 3
      %p165 = pnand %p163, %p164
      %p166 = pneg %p165
      // Predicated region
      $region9: #{tpu_custom_call.1} parent=5 // pred_check
        _
      $region10: #{tpu_custom_call.1} parent=5 // pred_check_branch
        %168 = sbr.rel (%p165) target = $region12
      $region11: #{tpu_custom_call.1} parent=5 // pred_region
        %s169 = ssub.s32 %s19, 1
        // Predicated region
        $region13: #{tpu_custom_call.1} parent=11 // pred_check
          %p170 = pneg %p66
        $region14: #{tpu_custom_call.1} parent=11 // pred_check_branch
          %172 = sbr.rel (%p170) target = $region16
        $region15: #{tpu_custom_call.1} parent=11 // pred_region
          %s174 = ssub.s32 512, 512
          %175 = vsyncadd [#allocation6], %s174
          %s176 = sshll.u32 [#allocation5], 4
          %s177 = int_to_ptr.vmem [resolvable:$true] %s176
          %182 = dma.hbm_to_vmem [thread:$0]  %s1, 512, %s177, [#allocation6], 128, 128, 8
        $region16: #{tpu_custom_call.1} parent=11 // pred_fallthru
          _
        // Predicated region
        $region17: #{tpu_custom_call.1} parent=11 // pred_check
          %p183 = pneg %p87
        $region18: #{tpu_custom_call.1} parent=11 // pred_check_branch
          %185 = sbr.rel (%p183) target = $region20
        $region19: #{tpu_custom_call.1} parent=11 // pred_region
          %s187 = ssub.s32 512, 512
          %188 = vsyncadd [#allocation6], %s187
          %s189 = sshll.u32 [#allocation7], 4
          %s190 = int_to_ptr.vmem [resolvable:$true] %s189
          %195 = dma.hbm_to_vmem [thread:$0]  %s2, 512, %s190, [#allocation6], 128, 128, 8
        $region20: #{tpu_custom_call.1} parent=11 // pred_fallthru
          _
        // Predicated region
        $region21: #{tpu_custom_call.1} parent=11 // pred_check
          %p196 = pneg %p108
        $region22: #{tpu_custom_call.1} parent=11 // pred_check_branch
          %198 = sbr.rel (%p196) target = $region24
        $region23: #{tpu_custom_call.1} parent=11 // pred_region
          %s200 = ssub.s32 512, 512
          %201 = vsyncadd [#allocation9], %s200
          %s202 = sshll.u32 [#allocation8], 4
          %s203 = int_to_ptr.vmem [resolvable:$true] %s202
          %208 = dma.hbm_to_vmem [thread:$0]  %s3, 512, %s203, [#allocation9], 128, 128, 8
        $region24: #{tpu_custom_call.1} parent=11 // pred_fallthru
          _
        // Predicated region
        $region25: #{tpu_custom_call.1} parent=11 // pred_check
          %p209 = pneg %p129
        $region26: #{tpu_custom_call.1} parent=11 // pred_check_branch
          %211 = sbr.rel (%p209) target = $region28
        $region27: #{tpu_custom_call.1} parent=11 // pred_region
          _
        $region28: #{tpu_custom_call.1} parent=11 // pred_fallthru
          _
      $region12: #{tpu_custom_call.1} parent=5 // pred_fallthru
        _
      %p212 = scmp.lt.s32.totalorder %s19, 2
      // Predicated region
      $region29: #{tpu_custom_call.1} parent=5 // pred_check
        %p213 = pneg %p212
      $region30: #{tpu_custom_call.1} parent=5 // pred_check_branch
        %215 = sbr.rel (%p213) target = $region32
      $region31: #{tpu_custom_call.1} parent=5 // pred_region
        // Predicated region
        $region33: #{tpu_custom_call.1} parent=31 // pred_check
          %p216 = pneg %p39
        $region34: #{tpu_custom_call.1} parent=31 // pred_check_branch
          %218 = sbr.rel (%p216) target = $region36
        $region35: #{tpu_custom_call.1} parent=31 // pred_region
          %s219 = sand.u32 %s29, 1
          %s220 = scalar_lea.sflag [#allocation3], %s219
          %s221 = sand.u32 %s29, 1
          %s222 = smul.addr %s221, 128
          %s223 = scalar_lea.vmem [#allocation2], %s222
          %s224 = smul.u32 4, %s19
          %s226 = ssub.s32 2048, 2048
          %227 = vsyncadd %s220, %s226
          %s228 = smul.addr %s224, 4
          %s229 = smul.addr %s228, 128
          %s230 = scalar_lea.hbm %s0, %s229
          %s231 = sshll.u32 %s223, 4
          %s232 = int_to_ptr.vmem [resolvable:$true] %s231
          %237 = dma.hbm_to_vmem [thread:$0]  %s230, 2048, %s232, %s220, 128, 128, 8
        $region36: #{tpu_custom_call.1} parent=31 // pred_fallthru
          _
      $region32: #{tpu_custom_call.1} parent=5 // pred_fallthru
        _
      %p238 = scmp.le.s32.totalorder 1, %s19
      %p239 = scmp.lt.s32.totalorder %s19, 3
      %p240 = pnand %p238, %p239
      %p241 = pneg %p240
      // Predicated region
      $region37: #{tpu_custom_call.1} parent=5 // pred_check
        _
      $region38: #{tpu_custom_call.1} parent=5 // pred_check_branch
        %243 = sbr.rel (%p240) target = $region40
      $region39: #{tpu_custom_call.1} parent=5 // pred_region
        %s244 = ssub.s32 %s19, 1
        %s245 = sand.u32 %s32, 1
        %s246 = scalar_lea.sflag [#allocation3], %s245
        %s247 = sand.u32 %s32, 1
        %s248 = smul.addr %s247, 128
        %s249 = scalar_lea.vmem [#allocation2], %s248
        // Predicated region
        $region41: #{tpu_custom_call.1} parent=39 // pred_check
          %p250 = pneg %p45
        $region42: #{tpu_custom_call.1} parent=39 // pred_check_branch
          %252 = sbr.rel (%p250) target = $region44
        $region43: #{tpu_custom_call.1} parent=39 // pred_region
          %253 = dma.done %s246, 2048
        $region44: #{tpu_custom_call.1} parent=39 // pred_fallthru
          _
        // Predicated region
        $region45: #{tpu_custom_call.1} parent=39 // pred_check
          %p254 = pneg %p66
        $region46: #{tpu_custom_call.1} parent=39 // pred_check_branch
          %256 = sbr.rel (%p254) target = $region48
        $region47: #{tpu_custom_call.1} parent=39 // pred_region
          %257 = dma.done [#allocation6], 512
        $region48: #{tpu_custom_call.1} parent=39 // pred_fallthru
          _
        // Predicated region
        $region49: #{tpu_custom_call.1} parent=39 // pred_check
          %p258 = pneg %p87
        $region50: #{tpu_custom_call.1} parent=39 // pred_check_branch
          %260 = sbr.rel (%p258) target = $region52
        $region51: #{tpu_custom_call.1} parent=39 // pred_region
          %261 = dma.done [#allocation6], 512
        $region52: #{tpu_custom_call.1} parent=39 // pred_fallthru
          _
        // Predicated region
        $region53: #{tpu_custom_call.1} parent=39 // pred_check
          %p262 = pneg %p108
        $region54: #{tpu_custom_call.1} parent=39 // pred_check_branch
          %264 = sbr.rel (%p262) target = $region56
        $region55: #{tpu_custom_call.1} parent=39 // pred_region
          %265 = dma.done [#allocation9], 512
        $region56: #{tpu_custom_call.1} parent=39 // pred_fallthru
          _
        %s266 = sand.u32 %s32, 1
        %s267 = scalar_lea.sflag [#allocation3], %s266
        %s268 = sand.u32 %s32, 1
        %s269 = smul.addr %s268, 128
        %s270 = scalar_lea.vmem [#allocation2], %s269
        %p271 = pneg %p45
        %p272 = pneg %p42
        %p273 = pneg %p66
        %p274 = pneg %p63
        %p275 = pneg %p87
        %p276 = pneg %p84
        %p277 = pneg %p108
        %p278 = pneg %p105
        %p279 = pneg %p129
        %p280 = pneg %p126
        %p281 = pneg %p155
        %p282 = pneg %p152
        %s283 = sand.u32 %s142, 1
        %s284 = scalar_lea.sflag [#allocation4], %s283
        %s285 = sand.u32 %s142, 1
        %s286 = smul.addr %s285, 128
        %s287 = scalar_lea.vmem [#allocation10], %s286
        %s288 = smul.u32 4, %s24
        %s289 = smul.u32 4, %s24
        %v290 = vld [vmem:[%s249] sm:$0xff]
        %v291 = vld [vmem:[%s249 + $0x8] sm:$0xff]
        %v292 = vld [vmem:[%s249 + $0x10] sm:$0xff]
        %v293 = vld [vmem:[%s249 + $0x18] sm:$0xff]
        %v294 = vld [vmem:[%s249 + $0x20] sm:$0xff]
        %v295 = vld [vmem:[%s249 + $0x28] sm:$0xff]
        %v296 = vld [vmem:[%s249 + $0x30] sm:$0xff]
        %v297 = vld [vmem:[%s249 + $0x38] sm:$0xff]
        %v298 = vld [vmem:[%s249 + $0x40] sm:$0xff]
        %v299 = vld [vmem:[%s249 + $0x48] sm:$0xff]
        %v300 = vld [vmem:[%s249 + $0x50] sm:$0xff]
        %v301 = vld [vmem:[%s249 + $0x58] sm:$0xff]
        %v302 = vld [vmem:[%s249 + $0x60] sm:$0xff]
        %v303 = vld [vmem:[%s249 + $0x68] sm:$0xff]
        %v304 = vld [vmem:[%s249 + $0x70] sm:$0xff]
        %v305 = vld [vmem:[%s249 + $0x78] sm:$0xff]
        %v306 = vld [vmem:[#allocation5] sm:$0xff]
        %v307 = vld [vmem:[#allocation5 + $0x8] sm:$0xff]
        %v308 = vld [vmem:[#allocation5 + $0x10] sm:$0xff]
        %v309 = vld [vmem:[#allocation5 + $0x18] sm:$0xff]
        %v310 = vld [vmem:[#allocation7] sm:$0xff]
        %v311 = vld [vmem:[#allocation7 + $0x8] sm:$0xff]
        %v312 = vld [vmem:[#allocation7 + $0x10] sm:$0xff]
        %v313 = vld [vmem:[#allocation7 + $0x18] sm:$0xff]
        %v314 = vld [vmem:[#allocation8] sm:$0xff]
        %v315 = vld [vmem:[#allocation8 + $0x8] sm:$0xff]
        %v316 = vld [vmem:[#allocation8 + $0x10] sm:$0xff]
        %v317 = vld [vmem:[#allocation8 + $0x18] sm:$0xff]
        %v318 = vld [vmem:[%s4] sm:$0x1]
        %319 = vadd.xlane.f32.xlu0 %v290
        %v320 = vpop.xlane.xlu0 %319
        %321 = vadd.xlane.f32.xlu0 %v291
        %v322 = vpop.xlane.xlu0 %321
        %323 = vadd.xlane.f32.xlu0 %v292
        %v324 = vpop.xlane.xlu0 %323
        %325 = vadd.xlane.f32.xlu0 %v293
        %v326 = vpop.xlane.xlu0 %325
        %327 = vadd.xlane.f32.xlu0 %v294
        %v328 = vpop.xlane.xlu0 %327
        %329 = vadd.xlane.f32.xlu0 %v295
        %v330 = vpop.xlane.xlu0 %329
        %331 = vadd.xlane.f32.xlu0 %v296
        %v332 = vpop.xlane.xlu0 %331
        %333 = vadd.xlane.f32.xlu0 %v297
        %v334 = vpop.xlane.xlu0 %333
        %335 = vadd.xlane.f32.xlu0 %v298
        %v336 = vpop.xlane.xlu0 %335
        %337 = vadd.xlane.f32.xlu0 %v299
        %v338 = vpop.xlane.xlu0 %337
        %339 = vadd.xlane.f32.xlu0 %v300
        %v340 = vpop.xlane.xlu0 %339
        %341 = vadd.xlane.f32.xlu0 %v301
        %v342 = vpop.xlane.xlu0 %341
        %343 = vadd.xlane.f32.xlu0 %v302
        %v344 = vpop.xlane.xlu0 %343
        %345 = vadd.xlane.f32.xlu0 %v303
        %v346 = vpop.xlane.xlu0 %345
        %347 = vadd.xlane.f32.xlu0 %v304
        %v348 = vpop.xlane.xlu0 %347
        %349 = vadd.xlane.f32.xlu0 %v305
        %v350 = vpop.xlane.xlu0 %349
        %v351 = vrcp.pop 128.0
        %v352 = vmul.f32 %v320, %v351
        %v353 = vmul.f32 %v322, %v351
        %v354 = vmul.f32 %v324, %v351
        %v355 = vmul.f32 %v326, %v351
        %v356 = vmul.f32 %v328, %v351
        %v357 = vmul.f32 %v330, %v351
        %v358 = vmul.f32 %v332, %v351
        %v359 = vmul.f32 %v334, %v351
        %v360 = vmul.f32 %v336, %v351
        %v361 = vmul.f32 %v338, %v351
        %v362 = vmul.f32 %v340, %v351
        %v363 = vmul.f32 %v342, %v351
        %v364 = vmul.f32 %v344, %v351
        %v365 = vmul.f32 %v346, %v351
        %v366 = vmul.f32 %v348, %v351
        %v367 = vmul.f32 %v350, %v351
        %v384 = vlaneseq
        %v385 = vand.u32 %v384, 127
        %v386 = vlaneseq
        %v387 = vshrl.u32 %v386, 7
        %v388 = vsub.s32 %v385, %v387
        %v389 = vrot.slane %v352, %v388
        %v390 = vadd.s32 %v385, 4294967288
        %v391 = vlaneseq
        %v392 = vshrl.u32 %v391, 7
        %v393 = vsub.s32 %v390, %v392
        %v394 = vrot.slane %v353, %v393
        %vm395 = vcmask 130112
        %v396 = vsel %vm395, %v394, %v389
        %v397 = vadd.s32 %v385, 4294967280
        %v398 = vlaneseq
        %v399 = vshrl.u32 %v398, 7
        %v400 = vsub.s32 %v397, %v399
        %v401 = vrot.slane %v354, %v400
        %vm402 = vcmask 195712
        %v403 = vsel %vm402, %v401, %v396
        %v404 = vadd.s32 %v385, 4294967272
        %v405 = vlaneseq
        %v406 = vshrl.u32 %v405, 7
        %v407 = vsub.s32 %v404, %v406
        %v408 = vrot.slane %v355, %v407
        %vm409 = vcmask 261312
        %v410 = vsel %vm409, %v408, %v403
        %v411 = vlaneseq
        %v412 = vshrl.u32 %v411, 7
        %v413 = vsub.s32 %v385, %v412
        %v414 = vrot.slane %v356, %v413
        %v415 = vlaneseq
        %v416 = vshrl.u32 %v415, 7
        %v417 = vsub.s32 %v390, %v416
        %v418 = vrot.slane %v357, %v417
        %v419 = vsel %vm395, %v418, %v414
        %v420 = vlaneseq
        %v421 = vshrl.u32 %v420, 7
        %v422 = vsub.s32 %v397, %v421
        %v423 = vrot.slane %v358, %v422
        %v424 = vsel %vm402, %v423, %v419
        %v425 = vlaneseq
        %v426 = vshrl.u32 %v425, 7
        %v427 = vsub.s32 %v404, %v426
        %v428 = vrot.slane %v359, %v427
        %v429 = vsel %vm409, %v428, %v424
        %v430 = vlaneseq
        %v431 = vshrl.u32 %v430, 7
        %v432 = vsub.s32 %v385, %v431
        %v433 = vrot.slane %v360, %v432
        %v434 = vlaneseq
        %v435 = vshrl.u32 %v434, 7
        %v436 = vsub.s32 %v390, %v435
        %v437 = vrot.slane %v361, %v436
        %v438 = vsel %vm395, %v437, %v433
        %v439 = vlaneseq
        %v440 = vshrl.u32 %v439, 7
        %v441 = vsub.s32 %v397, %v440
        %v442 = vrot.slane %v362, %v441
        %v443 = vsel %vm402, %v442, %v438
        %v444 = vlaneseq
        %v445 = vshrl.u32 %v444, 7
        %v446 = vsub.s32 %v404, %v445
        %v447 = vrot.slane %v363, %v446
        %v448 = vsel %vm409, %v447, %v443
        %v449 = vlaneseq
        %v450 = vshrl.u32 %v449, 7
        %v451 = vsub.s32 %v385, %v450
        %v452 = vrot.slane %v364, %v451
        %v453 = vlaneseq
        %v454 = vshrl.u32 %v453, 7
        %v455 = vsub.s32 %v390, %v454
        %v456 = vrot.slane %v365, %v455
        %v457 = vsel %vm395, %v456, %v452
        %v458 = vlaneseq
        %v459 = vshrl.u32 %v458, 7
        %v460 = vsub.s32 %v397, %v459
        %v461 = vrot.slane %v366, %v460
        %v462 = vsel %vm402, %v461, %v457
        %v463 = vlaneseq
        %v464 = vshrl.u32 %v463, 7
        %v465 = vsub.s32 %v404, %v464
        %v466 = vrot.slane %v367, %v465
        %v467 = vsel %vm409, %v466, %v462
        %vm468 = vcmask 1041409
        %v469 = vsel %vm468, %v429, %v410
        %vm470 = vcmask 1042434
        %v471 = vsel %vm470, %v448, %v469
        %vm472 = vcmask 1043459
        %v473 = vsel %vm472, %v467, %v471
        %vm474 = vcmask 261120
        %v475 = vsel %vm474, %v473, 0
        %v478 = vsel %vm474, %v306, 0
        %v481 = vsel %vm474, %v307, 0
        %v484 = vsel %vm474, %v308, 0
        %v487 = vsel %vm474, %v309, 0
        %489 = vmatprep.subr.mxu0 0.0
        %490 = vmatpush1.xpose.msra.mxu0 0.0
        %491 = vmatprep.subr.mxu0 0.0
        %492 = vmatpush1.xpose.msra.mxu0 0.0
        %493 = vmatprep.subr.mxu0 0.0
        %494 = vmatpush1.xpose.msra.mxu0 0.0
        %495 = vmatprep.subr.mxu0 0.0
        %496 = vmatpush1.xpose.msra.mxu0 0.0
        %497 = vmatprep.subr.mxu0 0.0
        %498 = vmatpush1.xpose.msra.mxu0 0.0
        %499 = vmatprep.subr.mxu0 0.0
        %500 = vmatpush1.xpose.msra.mxu0 0.0
        %501 = vmatprep.subr.mxu0 0.0
        %502 = vmatpush1.xpose.msra.mxu0 0.0
        %503 = vmatprep.subr.mxu0 0.0
        %504 = vmatpush1.xpose.msra.mxu0 0.0
        %505 = vmatprep.subr.mxu0 0.0
        %506 = vmatpush1.xpose.msra.mxu0 0.0
        %507 = vmatprep.subr.mxu0 0.0
        %508 = vmatpush1.xpose.msra.mxu0 0.0
        %509 = vmatprep.subr.mxu0 0.0
        %510 = vmatpush1.xpose.msra.mxu0 0.0
        %511 = vmatprep.subr.mxu0 0.0
        %512 = vmatpush1.xpose.msra.mxu0 0.0
        %513 = vmatprep.subr.mxu0 0.0
        %514 = vmatpush1.xpose.msra.mxu0 %v487
        %515 = vmatprep.subr.mxu0 0.0
        %516 = vmatpush1.xpose.msra.mxu0 %v484
        %517 = vmatprep.subr.mxu0 0.0
        %518 = vmatpush1.xpose.msra.mxu0 %v481
        %519 = vmatprep.subr.mxu0 0.0
        %520 = vmatpush1.xpose.msra.mxu0 %v478
        %521 = vmatprep.subr.mxu0 0.0
        %522 = vmatpush2.xpose.msra.mxu0 0.0
        %523 = vmatprep.subr.mxu0 0.0
        %524 = vmatpush2.xpose.msra.mxu0 0.0
        %525 = vmatprep.subr.mxu0 0.0
        %526 = vmatpush2.xpose.msra.mxu0 0.0
        %527 = vmatprep.subr.mxu0 0.0
        %528 = vmatpush2.xpose.msra.mxu0 0.0
        %529 = vmatprep.subr.mxu0 0.0
        %530 = vmatpush2.xpose.msra.mxu0 0.0
        %531 = vmatprep.subr.mxu0 0.0
        %532 = vmatpush2.xpose.msra.mxu0 0.0
        %533 = vmatprep.subr.mxu0 0.0
        %534 = vmatpush2.xpose.msra.mxu0 0.0
        %535 = vmatprep.subr.mxu0 0.0
        %536 = vmatpush2.xpose.msra.mxu0 0.0
        %537 = vmatprep.subr.mxu0 0.0
        %538 = vmatpush2.xpose.msra.mxu0 0.0
        %539 = vmatprep.subr.mxu0 0.0
        %540 = vmatpush2.xpose.msra.mxu0 0.0
        %541 = vmatprep.subr.mxu0 0.0
        %542 = vmatpush2.xpose.msra.mxu0 0.0
        %543 = vmatprep.subr.mxu0 0.0
        %544 = vmatpush2.xpose.msra.mxu0 0.0
        %545 = vmatprep.subr.mxu0 0.0
        %546 = vmatpush2.xpose.msra.mxu0 0.0
        %547 = vmatprep.subr.mxu0 0.0
        %548 = vmatpush2.xpose.msra.mxu0 0.0
        %549 = vmatprep.subr.mxu0 0.0
        %550 = vmatpush2.xpose.msra.mxu0 0.0
        %551 = vmatprep.subr.mxu0 0.0
        %552 = vmatpush2.xpose.msra.mxu0 0.0
        %553 = vmatprep.mubr.f32.mxu0 0.0
        %554 = vmatmul.mubr.f32.gmra.mxu0 %v475
        %v555 = vpop.f32.mrf.mxu0
        %v556 = vadd.f32 0.0, %v555
        %v557 = vpop.f32.mrf.mxu0
        %558 = vdwg.mxu0
        %v559 = vlaneseq
        %v560 = vshrl.u32 %v559, 7
        %v561 = vsub.s32 0, %v560
        %v562 = vrot.slane %v556, %v561
        %564 = vbcast.lane.b32.xlu0 %v562, 256
        %v565 = vpop.permute.xlu0 %564
        %s567 = sor.u32 256, 8
        %568 = vbcast.lane.b32.xlu0 %v562, %s567
        %v569 = vpop.permute.xlu0 %568
        %s571 = sor.u32 256, 16
        %572 = vbcast.lane.b32.xlu0 %v562, %s571
        %v573 = vpop.permute.xlu0 %572
        %s575 = sor.u32 256, 24
        %576 = vbcast.lane.b32.xlu0 %v562, %s575
        %v577 = vpop.permute.xlu0 %576
        %v578 = vlaneseq
        %v579 = vshrl.u32 %v578, 7
        %v580 = vsub.s32 1, %v579
        %v581 = vrot.slane %v556, %v580
        %583 = vbcast.lane.b32.xlu0 %v581, 256
        %v584 = vpop.permute.xlu0 %583
        %s586 = sor.u32 256, 8
        %587 = vbcast.lane.b32.xlu0 %v581, %s586
        %v588 = vpop.permute.xlu0 %587
        %s590 = sor.u32 256, 16
        %591 = vbcast.lane.b32.xlu0 %v581, %s590
        %v592 = vpop.permute.xlu0 %591
        %s594 = sor.u32 256, 24
        %595 = vbcast.lane.b32.xlu0 %v581, %s594
        %v596 = vpop.permute.xlu0 %595
        %v597 = vlaneseq
        %v598 = vshrl.u32 %v597, 7
        %v599 = vsub.s32 2, %v598
        %v600 = vrot.slane %v556, %v599
        %602 = vbcast.lane.b32.xlu0 %v600, 256
        %v603 = vpop.permute.xlu0 %602
        %s605 = sor.u32 256, 8
        %606 = vbcast.lane.b32.xlu0 %v600, %s605
        %v607 = vpop.permute.xlu0 %606
        %s609 = sor.u32 256, 16
        %610 = vbcast.lane.b32.xlu0 %v600, %s609
        %v611 = vpop.permute.xlu0 %610
        %s613 = sor.u32 256, 24
        %614 = vbcast.lane.b32.xlu0 %v600, %s613
        %v615 = vpop.permute.xlu0 %614
        %v616 = vlaneseq
        %v617 = vshrl.u32 %v616, 7
        %v618 = vsub.s32 3, %v617
        %v619 = vrot.slane %v556, %v618
        %621 = vbcast.lane.b32.xlu0 %v619, 256
        %v622 = vpop.permute.xlu0 %621
        %s624 = sor.u32 256, 8
        %625 = vbcast.lane.b32.xlu0 %v619, %s624
        %v626 = vpop.permute.xlu0 %625
        %s628 = sor.u32 256, 16
        %629 = vbcast.lane.b32.xlu0 %v619, %s628
        %v630 = vpop.permute.xlu0 %629
        %s632 = sor.u32 256, 24
        %633 = vbcast.lane.b32.xlu0 %v619, %s632
        %v634 = vpop.permute.xlu0 %633
        %v635 = vsub.f32 %v290, %v565
        %v636 = vsub.f32 %v291, %v569
        %v637 = vsub.f32 %v292, %v573
        %v638 = vsub.f32 %v293, %v577
        %v639 = vsub.f32 %v294, %v584
        %v640 = vsub.f32 %v295, %v588
        %v641 = vsub.f32 %v296, %v592
        %v642 = vsub.f32 %v297, %v596
        %v643 = vsub.f32 %v298, %v603
        %v644 = vsub.f32 %v299, %v607
        %v645 = vsub.f32 %v300, %v611
        %v646 = vsub.f32 %v301, %v615
        %v647 = vsub.f32 %v302, %v622
        %v648 = vsub.f32 %v303, %v626
        %v649 = vsub.f32 %v304, %v630
        %v650 = vsub.f32 %v305, %v634
        %v651 = vmul.f32 %v635, %v635
        %v652 = vmul.f32 %v636, %v636
        %v653 = vmul.f32 %v637, %v637
        %v654 = vmul.f32 %v638, %v638
        %v655 = vmul.f32 %v639, %v639
        %v656 = vmul.f32 %v640, %v640
        %v657 = vmul.f32 %v641, %v641
        %v658 = vmul.f32 %v642, %v642
        %v659 = vmul.f32 %v643, %v643
        %v660 = vmul.f32 %v644, %v644
        %v661 = vmul.f32 %v645, %v645
        %v662 = vmul.f32 %v646, %v646
        %v663 = vmul.f32 %v647, %v647
        %v664 = vmul.f32 %v648, %v648
        %v665 = vmul.f32 %v649, %v649
        %v666 = vmul.f32 %v650, %v650
        %667 = vadd.xlane.f32.xlu0 %v651
        %v668 = vpop.xlane.xlu0 %667
        %669 = vadd.xlane.f32.xlu0 %v652
        %v670 = vpop.xlane.xlu0 %669
        %671 = vadd.xlane.f32.xlu0 %v653
        %v672 = vpop.xlane.xlu0 %671
        %673 = vadd.xlane.f32.xlu0 %v654
        %v674 = vpop.xlane.xlu0 %673
        %675 = vadd.xlane.f32.xlu0 %v655
        %v676 = vpop.xlane.xlu0 %675
        %677 = vadd.xlane.f32.xlu0 %v656
        %v678 = vpop.xlane.xlu0 %677
        %679 = vadd.xlane.f32.xlu0 %v657
        %v680 = vpop.xlane.xlu0 %679
        %681 = vadd.xlane.f32.xlu0 %v658
        %v682 = vpop.xlane.xlu0 %681
        %683 = vadd.xlane.f32.xlu0 %v659
        %v684 = vpop.xlane.xlu0 %683
        %685 = vadd.xlane.f32.xlu0 %v660
        %v686 = vpop.xlane.xlu0 %685
        %687 = vadd.xlane.f32.xlu0 %v661
        %v688 = vpop.xlane.xlu0 %687
        %689 = vadd.xlane.f32.xlu0 %v662
        %v690 = vpop.xlane.xlu0 %689
        %691 = vadd.xlane.f32.xlu0 %v663
        %v692 = vpop.xlane.xlu0 %691
        %693 = vadd.xlane.f32.xlu0 %v664
        %v694 = vpop.xlane.xlu0 %693
        %695 = vadd.xlane.f32.xlu0 %v665
        %v696 = vpop.xlane.xlu0 %695
        %697 = vadd.xlane.f32.xlu0 %v666
        %v698 = vpop.xlane.xlu0 %697
        %v699 = vmul.f32 %v668, %v351
        %v700 = vmul.f32 %v670, %v351
        %v701 = vmul.f32 %v672, %v351
        %v702 = vmul.f32 %v674, %v351
        %v703 = vmul.f32 %v676, %v351
        %v704 = vmul.f32 %v678, %v351
        %v705 = vmul.f32 %v680, %v351
        %v706 = vmul.f32 %v682, %v351
        %v707 = vmul.f32 %v684, %v351
        %v708 = vmul.f32 %v686, %v351
        %v709 = vmul.f32 %v688, %v351
        %v710 = vmul.f32 %v690, %v351
        %v711 = vmul.f32 %v692, %v351
        %v712 = vmul.f32 %v694, %v351
        %v713 = vmul.f32 %v696, %v351
        %v714 = vmul.f32 %v698, %v351
        %v715 = vadd.f32 %v699, 1e-08
        %v716 = vadd.f32 %v700, 1e-08
        %v717 = vadd.f32 %v701, 1e-08
        %v718 = vadd.f32 %v702, 1e-08
        %v719 = vadd.f32 %v703, 1e-08
        %v720 = vadd.f32 %v704, 1e-08
        %v721 = vadd.f32 %v705, 1e-08
        %v722 = vadd.f32 %v706, 1e-08
        %v723 = vadd.f32 %v707, 1e-08
        %v724 = vadd.f32 %v708, 1e-08
        %v725 = vadd.f32 %v709, 1e-08
        %v726 = vadd.f32 %v710, 1e-08
        %v727 = vadd.f32 %v711, 1e-08
        %v728 = vadd.f32 %v712, 1e-08
        %v729 = vadd.f32 %v713, 1e-08
        %v730 = vadd.f32 %v714, 1e-08
        %v731 = vrsqrt.pop %v715
        %v732 = vmul.f32 %v715, %v731
        %vm733 = vcmp.eq.f32.partialorder %v715, inf
        %v734 = vsel %vm733, %v715, %v732
        %vm735 = vcmp.eq.f32.partialorder %v715, 0.0
        %v736 = vand.u32 %v715, 2147483648
        %v737 = vsel %vm735, %v736, %v734
        %v738 = vrsqrt.pop %v716
        %v739 = vmul.f32 %v716, %v738
        %vm740 = vcmp.eq.f32.partialorder %v716, inf
        %v741 = vsel %vm740, %v716, %v739
        %vm742 = vcmp.eq.f32.partialorder %v716, 0.0
        %v743 = vand.u32 %v716, 2147483648
        %v744 = vsel %vm742, %v743, %v741
        %v745 = vrsqrt.pop %v717
        %v746 = vmul.f32 %v717, %v745
        %vm747 = vcmp.eq.f32.partialorder %v717, inf
        %v748 = vsel %vm747, %v717, %v746
        %vm749 = vcmp.eq.f32.partialorder %v717, 0.0
        %v750 = vand.u32 %v717, 2147483648
        %v751 = vsel %vm749, %v750, %v748
        %v752 = vrsqrt.pop %v718
        %v753 = vmul.f32 %v718, %v752
        %vm754 = vcmp.eq.f32.partialorder %v718, inf
        %v755 = vsel %vm754, %v718, %v753
        %vm756 = vcmp.eq.f32.partialorder %v718, 0.0
        %v757 = vand.u32 %v718, 2147483648
        %v758 = vsel %vm756, %v757, %v755
        %v759 = vrsqrt.pop %v719
        %v760 = vmul.f32 %v719, %v759
        %vm761 = vcmp.eq.f32.partialorder %v719, inf
        %v762 = vsel %vm761, %v719, %v760
        %vm763 = vcmp.eq.f32.partialorder %v719, 0.0
        %v764 = vand.u32 %v719, 2147483648
        %v765 = vsel %vm763, %v764, %v762
        %v766 = vrsqrt.pop %v720
        %v767 = vmul.f32 %v720, %v766
        %vm768 = vcmp.eq.f32.partialorder %v720, inf
        %v769 = vsel %vm768, %v720, %v767
        %vm770 = vcmp.eq.f32.partialorder %v720, 0.0
        %v771 = vand.u32 %v720, 2147483648
        %v772 = vsel %vm770, %v771, %v769
        %v773 = vrsqrt.pop %v721
        %v774 = vmul.f32 %v721, %v773
        %vm775 = vcmp.eq.f32.partialorder %v721, inf
        %v776 = vsel %vm775, %v721, %v774
        %vm777 = vcmp.eq.f32.partialorder %v721, 0.0
        %v778 = vand.u32 %v721, 2147483648
        %v779 = vsel %vm777, %v778, %v776
        %v780 = vrsqrt.pop %v722
        %v781 = vmul.f32 %v722, %v780
        %vm782 = vcmp.eq.f32.partialorder %v722, inf
        %v783 = vsel %vm782, %v722, %v781
        %vm784 = vcmp.eq.f32.partialorder %v722, 0.0
        %v785 = vand.u32 %v722, 2147483648
        %v786 = vsel %vm784, %v785, %v783
        %v787 = vrsqrt.pop %v723
        %v788 = vmul.f32 %v723, %v787
        %vm789 = vcmp.eq.f32.partialorder %v723, inf
        %v790 = vsel %vm789, %v723, %v788
        %vm791 = vcmp.eq.f32.partialorder %v723, 0.0
        %v792 = vand.u32 %v723, 2147483648
        %v793 = vsel %vm791, %v792, %v790
        %v794 = vrsqrt.pop %v724
        %v795 = vmul.f32 %v724, %v794
        %vm796 = vcmp.eq.f32.partialorder %v724, inf
        %v797 = vsel %vm796, %v724, %v795
        %vm798 = vcmp.eq.f32.partialorder %v724, 0.0
        %v799 = vand.u32 %v724, 2147483648
        %v800 = vsel %vm798, %v799, %v797
        %v801 = vrsqrt.pop %v725
        %v802 = vmul.f32 %v725, %v801
        %vm803 = vcmp.eq.f32.partialorder %v725, inf
        %v804 = vsel %vm803, %v725, %v802
        %vm805 = vcmp.eq.f32.partialorder %v725, 0.0
        %v806 = vand.u32 %v725, 2147483648
        %v807 = vsel %vm805, %v806, %v804
        %v808 = vrsqrt.pop %v726
        %v809 = vmul.f32 %v726, %v808
        %vm810 = vcmp.eq.f32.partialorder %v726, inf
        %v811 = vsel %vm810, %v726, %v809
        %vm812 = vcmp.eq.f32.partialorder %v726, 0.0
        %v813 = vand.u32 %v726, 2147483648
        %v814 = vsel %vm812, %v813, %v811
        %v815 = vrsqrt.pop %v727
        %v816 = vmul.f32 %v727, %v815
        %vm817 = vcmp.eq.f32.partialorder %v727, inf
        %v818 = vsel %vm817, %v727, %v816
        %vm819 = vcmp.eq.f32.partialorder %v727, 0.0
        %v820 = vand.u32 %v727, 2147483648
        %v821 = vsel %vm819, %v820, %v818
        %v822 = vrsqrt.pop %v728
        %v823 = vmul.f32 %v728, %v822
        %vm824 = vcmp.eq.f32.partialorder %v728, inf
        %v825 = vsel %vm824, %v728, %v823
        %vm826 = vcmp.eq.f32.partialorder %v728, 0.0
        %v827 = vand.u32 %v728, 2147483648
        %v828 = vsel %vm826, %v827, %v825
        %v829 = vrsqrt.pop %v729
        %v830 = vmul.f32 %v729, %v829
        %vm831 = vcmp.eq.f32.partialorder %v729, inf
        %v832 = vsel %vm831, %v729, %v830
        %vm833 = vcmp.eq.f32.partialorder %v729, 0.0
        %v834 = vand.u32 %v729, 2147483648
        %v835 = vsel %vm833, %v834, %v832
        %v836 = vrsqrt.pop %v730
        %v837 = vmul.f32 %v730, %v836
        %vm838 = vcmp.eq.f32.partialorder %v730, inf
        %v839 = vsel %vm838, %v730, %v837
        %vm840 = vcmp.eq.f32.partialorder %v730, 0.0
        %v841 = vand.u32 %v730, 2147483648
        %v842 = vsel %vm840, %v841, %v839
        %v859 = vlaneseq
        %v860 = vshrl.u32 %v859, 7
        %v861 = vsub.s32 %v385, %v860
        %v862 = vrot.slane %v737, %v861
        %v863 = vlaneseq
        %v864 = vshrl.u32 %v863, 7
        %v865 = vsub.s32 %v390, %v864
        %v866 = vrot.slane %v744, %v865
        %v867 = vsel %vm395, %v866, %v862
        %v868 = vlaneseq
        %v869 = vshrl.u32 %v868, 7
        %v870 = vsub.s32 %v397, %v869
        %v871 = vrot.slane %v751, %v870
        %v872 = vsel %vm402, %v871, %v867
        %v873 = vlaneseq
        %v874 = vshrl.u32 %v873, 7
        %v875 = vsub.s32 %v404, %v874
        %v876 = vrot.slane %v758, %v875
        %v877 = vsel %vm409, %v876, %v872
        %v878 = vlaneseq
        %v879 = vshrl.u32 %v878, 7
        %v880 = vsub.s32 %v385, %v879
        %v881 = vrot.slane %v765, %v880
        %v882 = vlaneseq
        %v883 = vshrl.u32 %v882, 7
        %v884 = vsub.s32 %v390, %v883
        %v885 = vrot.slane %v772, %v884
        %v886 = vsel %vm395, %v885, %v881
        %v887 = vlaneseq
        %v888 = vshrl.u32 %v887, 7
        %v889 = vsub.s32 %v397, %v888
        %v890 = vrot.slane %v779, %v889
        %v891 = vsel %vm402, %v890, %v886
        %v892 = vlaneseq
        %v893 = vshrl.u32 %v892, 7
        %v894 = vsub.s32 %v404, %v893
        %v895 = vrot.slane %v786, %v894
        %v896 = vsel %vm409, %v895, %v891
        %v897 = vlaneseq
        %v898 = vshrl.u32 %v897, 7
        %v899 = vsub.s32 %v385, %v898
        %v900 = vrot.slane %v793, %v899
        %v901 = vlaneseq
        %v902 = vshrl.u32 %v901, 7
        %v903 = vsub.s32 %v390, %v902
        %v904 = vrot.slane %v800, %v903
        %v905 = vsel %vm395, %v904, %v900
        %v906 = vlaneseq
        %v907 = vshrl.u32 %v906, 7
        %v908 = vsub.s32 %v397, %v907
        %v909 = vrot.slane %v807, %v908
        %v910 = vsel %vm402, %v909, %v905
        %v911 = vlaneseq
        %v912 = vshrl.u32 %v911, 7
        %v913 = vsub.s32 %v404, %v912
        %v914 = vrot.slane %v814, %v913
        %v915 = vsel %vm409, %v914, %v910
        %v916 = vlaneseq
        %v917 = vshrl.u32 %v916, 7
        %v918 = vsub.s32 %v385, %v917
        %v919 = vrot.slane %v821, %v918
        %v920 = vlaneseq
        %v921 = vshrl.u32 %v920, 7
        %v922 = vsub.s32 %v390, %v921
        %v923 = vrot.slane %v828, %v922
        %v924 = vsel %vm395, %v923, %v919
        %v925 = vlaneseq
        %v926 = vshrl.u32 %v925, 7
        %v927 = vsub.s32 %v397, %v926
        %v928 = vrot.slane %v835, %v927
        %v929 = vsel %vm402, %v928, %v924
        %v930 = vlaneseq
        %v931 = vshrl.u32 %v930, 7
        %v932 = vsub.s32 %v404, %v931
        %v933 = vrot.slane %v842, %v932
        %v934 = vsel %vm409, %v933, %v929
        %v935 = vsel %vm468, %v896, %v877
        %v936 = vsel %vm470, %v915, %v935
        %v937 = vsel %vm472, %v934, %v936
        %v938 = vsel %vm474, %v937, 0
        %v941 = vsel %vm474, %v310, 0
        %v944 = vsel %vm474, %v311, 0
        %v947 = vsel %vm474, %v312, 0
        %v950 = vsel %vm474, %v313, 0
        %952 = vmatprep.subr.mxu0 0.0
        %953 = vmatpush1.xpose.msra.mxu0 0.0
        %954 = vmatprep.subr.mxu0 0.0
        %955 = vmatpush1.xpose.msra.mxu0 0.0
        %956 = vmatprep.subr.mxu0 0.0
        %957 = vmatpush1.xpose.msra.mxu0 0.0
        %958 = vmatprep.subr.mxu0 0.0
        %959 = vmatpush1.xpose.msra.mxu0 0.0
        %960 = vmatprep.subr.mxu0 0.0
        %961 = vmatpush1.xpose.msra.mxu0 0.0
        %962 = vmatprep.subr.mxu0 0.0
        %963 = vmatpush1.xpose.msra.mxu0 0.0
        %964 = vmatprep.subr.mxu0 0.0
        %965 = vmatpush1.xpose.msra.mxu0 0.0
        %966 = vmatprep.subr.mxu0 0.0
        %967 = vmatpush1.xpose.msra.mxu0 0.0
        %968 = vmatprep.subr.mxu0 0.0
        %969 = vmatpush1.xpose.msra.mxu0 0.0
        %970 = vmatprep.subr.mxu0 0.0
        %971 = vmatpush1.xpose.msra.mxu0 0.0
        %972 = vmatprep.subr.mxu0 0.0
        %973 = vmatpush1.xpose.msra.mxu0 0.0
        %974 = vmatprep.subr.mxu0 0.0
        %975 = vmatpush1.xpose.msra.mxu0 0.0
        %976 = vmatprep.subr.mxu0 0.0
        %977 = vmatpush1.xpose.msra.mxu0 %v950
        %978 = vmatprep.subr.mxu0 0.0
        %979 = vmatpush1.xpose.msra.mxu0 %v947
        %980 = vmatprep.subr.mxu0 0.0
        %981 = vmatpush1.xpose.msra.mxu0 %v944
        %982 = vmatprep.subr.mxu0 0.0
        %983 = vmatpush1.xpose.msra.mxu0 %v941
        %984 = vmatprep.subr.mxu0 0.0
        %985 = vmatpush2.xpose.msra.mxu0 0.0
        %986 = vmatprep.subr.mxu0 0.0
        %987 = vmatpush2.xpose.msra.mxu0 0.0
        %988 = vmatprep.subr.mxu0 0.0
        %989 = vmatpush2.xpose.msra.mxu0 0.0
        %990 = vmatprep.subr.mxu0 0.0
        %991 = vmatpush2.xpose.msra.mxu0 0.0
        %992 = vmatprep.subr.mxu0 0.0
        %993 = vmatpush2.xpose.msra.mxu0 0.0
        %994 = vmatprep.subr.mxu0 0.0
        %995 = vmatpush2.xpose.msra.mxu0 0.0
        %996 = vmatprep.subr.mxu0 0.0
        %997 = vmatpush2.xpose.msra.mxu0 0.0
        %998 = vmatprep.subr.mxu0 0.0
        %999 = vmatpush2.xpose.msra.mxu0 0.0
        %1000 = vmatprep.subr.mxu0 0.0
        %1001 = vmatpush2.xpose.msra.mxu0 0.0
        %1002 = vmatprep.subr.mxu0 0.0
        %1003 = vmatpush2.xpose.msra.mxu0 0.0
        %1004 = vmatprep.subr.mxu0 0.0
        %1005 = vmatpush2.xpose.msra.mxu0 0.0
        %1006 = vmatprep.subr.mxu0 0.0
        %1007 = vmatpush2.xpose.msra.mxu0 0.0
        %1008 = vmatprep.subr.mxu0 0.0
        %1009 = vmatpush2.xpose.msra.mxu0 0.0
        %1010 = vmatprep.subr.mxu0 0.0
        %1011 = vmatpush2.xpose.msra.mxu0 0.0
        %1012 = vmatprep.subr.mxu0 0.0
        %1013 = vmatpush2.xpose.msra.mxu0 0.0
        %1014 = vmatprep.subr.mxu0 0.0
        %1015 = vmatpush2.xpose.msra.mxu0 0.0
        %1016 = vmatprep.mubr.f32.mxu0 0.0
        %1017 = vmatmul.mubr.f32.gmra.mxu0 %v938
        %v1018 = vpop.f32.mrf.mxu0
        %v1019 = vadd.f32 0.0, %v1018
        %v1020 = vpop.f32.mrf.mxu0
        %1021 = vdwg.mxu0
        %vm1022 = vcmp.le.f32.partialorder %v1019, 1e-08
        %v1023 = vsel %vm1022, 1.0, %v1019
        %v1024 = vrcp.pop %v1023
        %v1026 = vlaneseq
        %v1027 = vshrl.u32 %v1026, 7
        %v1028 = vsub.s32 0, %v1027
        %v1029 = vrot.slane %v556, %v1028
        %1031 = vbcast.lane.b32.xlu0 %v1029, 256
        %v1032 = vpop.permute.xlu0 %1031
        %s1034 = sor.u32 256, 8
        %1035 = vbcast.lane.b32.xlu0 %v1029, %s1034
        %v1036 = vpop.permute.xlu0 %1035
        %s1038 = sor.u32 256, 16
        %1039 = vbcast.lane.b32.xlu0 %v1029, %s1038
        %v1040 = vpop.permute.xlu0 %1039
        %s1042 = sor.u32 256, 24
        %1043 = vbcast.lane.b32.xlu0 %v1029, %s1042
        %v1044 = vpop.permute.xlu0 %1043
        %v1045 = vlaneseq
        %v1046 = vshrl.u32 %v1045, 7
        %v1047 = vsub.s32 1, %v1046
        %v1048 = vrot.slane %v556, %v1047
        %1050 = vbcast.lane.b32.xlu0 %v1048, 256
        %v1051 = vpop.permute.xlu0 %1050
        %s1053 = sor.u32 256, 8
        %1054 = vbcast.lane.b32.xlu0 %v1048, %s1053
        %v1055 = vpop.permute.xlu0 %1054
        %s1057 = sor.u32 256, 16
        %1058 = vbcast.lane.b32.xlu0 %v1048, %s1057
        %v1059 = vpop.permute.xlu0 %1058
        %s1061 = sor.u32 256, 24
        %1062 = vbcast.lane.b32.xlu0 %v1048, %s1061
        %v1063 = vpop.permute.xlu0 %1062
        %v1064 = vlaneseq
        %v1065 = vshrl.u32 %v1064, 7
        %v1066 = vsub.s32 2, %v1065
        %v1067 = vrot.slane %v556, %v1066
        %1069 = vbcast.lane.b32.xlu0 %v1067, 256
        %v1070 = vpop.permute.xlu0 %1069
        %s1072 = sor.u32 256, 8
        %1073 = vbcast.lane.b32.xlu0 %v1067, %s1072
        %v1074 = vpop.permute.xlu0 %1073
        %s1076 = sor.u32 256, 16
        %1077 = vbcast.lane.b32.xlu0 %v1067, %s1076
        %v1078 = vpop.permute.xlu0 %1077
        %s1080 = sor.u32 256, 24
        %1081 = vbcast.lane.b32.xlu0 %v1067, %s1080
        %v1082 = vpop.permute.xlu0 %1081
        %v1083 = vlaneseq
        %v1084 = vshrl.u32 %v1083, 7
        %v1085 = vsub.s32 3, %v1084
        %v1086 = vrot.slane %v556, %v1085
        %1088 = vbcast.lane.b32.xlu0 %v1086, 256
        %v1089 = vpop.permute.xlu0 %1088
        %s1091 = sor.u32 256, 8
        %1092 = vbcast.lane.b32.xlu0 %v1086, %s1091
        %v1093 = vpop.permute.xlu0 %1092
        %s1095 = sor.u32 256, 16
        %1096 = vbcast.lane.b32.xlu0 %v1086, %s1095
        %v1097 = vpop.permute.xlu0 %1096
        %s1099 = sor.u32 256, 24
        %1100 = vbcast.lane.b32.xlu0 %v1086, %s1099
        %v1101 = vpop.permute.xlu0 %1100
        %v1118 = vsub.f32 %v352, %v1032
        %v1119 = vsub.f32 %v353, %v1036
        %v1120 = vsub.f32 %v354, %v1040
        %v1121 = vsub.f32 %v355, %v1044
        %v1122 = vsub.f32 %v356, %v1051
        %v1123 = vsub.f32 %v357, %v1055
        %v1124 = vsub.f32 %v358, %v1059
        %v1125 = vsub.f32 %v359, %v1063
        %v1126 = vsub.f32 %v360, %v1070
        %v1127 = vsub.f32 %v361, %v1074
        %v1128 = vsub.f32 %v362, %v1078
        %v1129 = vsub.f32 %v363, %v1082
        %v1130 = vsub.f32 %v364, %v1089
        %v1131 = vsub.f32 %v365, %v1093
        %v1132 = vsub.f32 %v366, %v1097
        %v1133 = vsub.f32 %v367, %v1101
        %v1135 = vlaneseq
        %v1136 = vshrl.u32 %v1135, 7
        %v1137 = vsub.s32 0, %v1136
        %v1138 = vrot.slane %v1024, %v1137
        %1140 = vbcast.lane.b32.xlu0 %v1138, 256
        %v1141 = vpop.permute.xlu0 %1140
        %s1143 = sor.u32 256, 8
        %1144 = vbcast.lane.b32.xlu0 %v1138, %s1143
        %v1145 = vpop.permute.xlu0 %1144
        %s1147 = sor.u32 256, 16
        %1148 = vbcast.lane.b32.xlu0 %v1138, %s1147
        %v1149 = vpop.permute.xlu0 %1148
        %s1151 = sor.u32 256, 24
        %1152 = vbcast.lane.b32.xlu0 %v1138, %s1151
        %v1153 = vpop.permute.xlu0 %1152
        %v1154 = vlaneseq
        %v1155 = vshrl.u32 %v1154, 7
        %v1156 = vsub.s32 1, %v1155
        %v1157 = vrot.slane %v1024, %v1156
        %1159 = vbcast.lane.b32.xlu0 %v1157, 256
        %v1160 = vpop.permute.xlu0 %1159
        %s1162 = sor.u32 256, 8
        %1163 = vbcast.lane.b32.xlu0 %v1157, %s1162
        %v1164 = vpop.permute.xlu0 %1163
        %s1166 = sor.u32 256, 16
        %1167 = vbcast.lane.b32.xlu0 %v1157, %s1166
        %v1168 = vpop.permute.xlu0 %1167
        %s1170 = sor.u32 256, 24
        %1171 = vbcast.lane.b32.xlu0 %v1157, %s1170
        %v1172 = vpop.permute.xlu0 %1171
        %v1173 = vlaneseq
        %v1174 = vshrl.u32 %v1173, 7
        %v1175 = vsub.s32 2, %v1174
        %v1176 = vrot.slane %v1024, %v1175
        %1178 = vbcast.lane.b32.xlu0 %v1176, 256
        %v1179 = vpop.permute.xlu0 %1178
        %s1181 = sor.u32 256, 8
        %1182 = vbcast.lane.b32.xlu0 %v1176, %s1181
        %v1183 = vpop.permute.xlu0 %1182
        %s1185 = sor.u32 256, 16
        %1186 = vbcast.lane.b32.xlu0 %v1176, %s1185
        %v1187 = vpop.permute.xlu0 %1186
        %s1189 = sor.u32 256, 24
        %1190 = vbcast.lane.b32.xlu0 %v1176, %s1189
        %v1191 = vpop.permute.xlu0 %1190
        %v1192 = vlaneseq
        %v1193 = vshrl.u32 %v1192, 7
        %v1194 = vsub.s32 3, %v1193
        %v1195 = vrot.slane %v1024, %v1194
        %1197 = vbcast.lane.b32.xlu0 %v1195, 256
        %v1198 = vpop.permute.xlu0 %1197
        %s1200 = sor.u32 256, 8
        %1201 = vbcast.lane.b32.xlu0 %v1195, %s1200
        %v1202 = vpop.permute.xlu0 %1201
        %s1204 = sor.u32 256, 16
        %1205 = vbcast.lane.b32.xlu0 %v1195, %s1204
        %v1206 = vpop.permute.xlu0 %1205
        %s1208 = sor.u32 256, 24
        %1209 = vbcast.lane.b32.xlu0 %v1195, %s1208
        %v1210 = vpop.permute.xlu0 %1209
        %v1227 = vmul.f32 %v1118, %v1141
        %v1228 = vmul.f32 %v1119, %v1145
        %v1229 = vmul.f32 %v1120, %v1149
        %v1230 = vmul.f32 %v1121, %v1153
        %v1231 = vmul.f32 %v1122, %v1160
        %v1232 = vmul.f32 %v1123, %v1164
        %v1233 = vmul.f32 %v1124, %v1168
        %v1234 = vmul.f32 %v1125, %v1172
        %v1235 = vmul.f32 %v1126, %v1179
        %v1236 = vmul.f32 %v1127, %v1183
        %v1237 = vmul.f32 %v1128, %v1187
        %v1238 = vmul.f32 %v1129, %v1191
        %v1239 = vmul.f32 %v1130, %v1198
        %v1240 = vmul.f32 %v1131, %v1202
        %v1241 = vmul.f32 %v1132, %v1206
        %v1242 = vmul.f32 %v1133, %v1210
        %v1244 = vlaneseq
        %v1245 = vshrl.u32 %v1244, 7
        %v1246 = vsub.s32 0, %v1245
        %v1247 = vrot.slane %v318, %v1246
        %1265 = vset.pattern.permute.xlu0 0
        %1266 = vperm.xlu0 %1265, %v1227
        %v1267 = vpop.permute.xlu0 %1266
        %1268 = vset.pattern.permute.xlu0 0
        %1269 = vperm.xlu0 %1268, %v1228
        %v1270 = vpop.permute.xlu0 %1269
        %1271 = vset.pattern.permute.xlu0 0
        %1272 = vperm.xlu0 %1271, %v1229
        %v1273 = vpop.permute.xlu0 %1272
        %1274 = vset.pattern.permute.xlu0 0
        %1275 = vperm.xlu0 %1274, %v1230
        %v1276 = vpop.permute.xlu0 %1275
        %1277 = vset.pattern.permute.xlu0 0
        %1278 = vperm.xlu0 %1277, %v1231
        %v1279 = vpop.permute.xlu0 %1278
        %1280 = vset.pattern.permute.xlu0 0
        %1281 = vperm.xlu0 %1280, %v1232
        %v1282 = vpop.permute.xlu0 %1281
        %1283 = vset.pattern.permute.xlu0 0
        %1284 = vperm.xlu0 %1283, %v1233
        %v1285 = vpop.permute.xlu0 %1284
        %1286 = vset.pattern.permute.xlu0 0
        %1287 = vperm.xlu0 %1286, %v1234
        %v1288 = vpop.permute.xlu0 %1287
        %1289 = vset.pattern.permute.xlu0 0
        %1290 = vperm.xlu0 %1289, %v1235
        %v1291 = vpop.permute.xlu0 %1290
        %1292 = vset.pattern.permute.xlu0 0
        %1293 = vperm.xlu0 %1292, %v1236
        %v1294 = vpop.permute.xlu0 %1293
        %1295 = vset.pattern.permute.xlu0 0
        %1296 = vperm.xlu0 %1295, %v1237
        %v1297 = vpop.permute.xlu0 %1296
        %1298 = vset.pattern.permute.xlu0 0
        %1299 = vperm.xlu0 %1298, %v1238
        %v1300 = vpop.permute.xlu0 %1299
        %1301 = vset.pattern.permute.xlu0 0
        %1302 = vperm.xlu0 %1301, %v1239
        %v1303 = vpop.permute.xlu0 %1302
        %1304 = vset.pattern.permute.xlu0 0
        %1305 = vperm.xlu0 %1304, %v1240
        %v1306 = vpop.permute.xlu0 %1305
        %1307 = vset.pattern.permute.xlu0 0
        %1308 = vperm.xlu0 %1307, %v1241
        %v1309 = vpop.permute.xlu0 %1308
        %1310 = vset.pattern.permute.xlu0 0
        %1311 = vperm.xlu0 %1310, %v1242
        %v1312 = vpop.permute.xlu0 %1311
        %v1313 = vlaneseq
        %v1314 = vshrl.u32 %v1313, 7
        %v1315 = vsub.s32 %v385, %v1314
        %v1316 = vrot.slane %v1267, %v1315
        %v1317 = vlaneseq
        %v1318 = vshrl.u32 %v1317, 7
        %v1319 = vsub.s32 %v390, %v1318
        %v1320 = vrot.slane %v1270, %v1319
        %v1321 = vsel %vm395, %v1320, %v1316
        %v1322 = vlaneseq
        %v1323 = vshrl.u32 %v1322, 7
        %v1324 = vsub.s32 %v397, %v1323
        %v1325 = vrot.slane %v1273, %v1324
        %v1326 = vsel %vm402, %v1325, %v1321
        %v1327 = vlaneseq
        %v1328 = vshrl.u32 %v1327, 7
        %v1329 = vsub.s32 %v404, %v1328
        %v1330 = vrot.slane %v1276, %v1329
        %v1331 = vsel %vm409, %v1330, %v1326
        %v1332 = vlaneseq
        %v1333 = vshrl.u32 %v1332, 7
        %v1334 = vsub.s32 %v385, %v1333
        %v1335 = vrot.slane %v1279, %v1334
        %v1336 = vlaneseq
        %v1337 = vshrl.u32 %v1336, 7
        %v1338 = vsub.s32 %v390, %v1337
        %v1339 = vrot.slane %v1282, %v1338
        %v1340 = vsel %vm395, %v1339, %v1335
        %v1341 = vlaneseq
        %v1342 = vshrl.u32 %v1341, 7
        %v1343 = vsub.s32 %v397, %v1342
        %v1344 = vrot.slane %v1285, %v1343
        %v1345 = vsel %vm402, %v1344, %v1340
        %v1346 = vlaneseq
        %v1347 = vshrl.u32 %v1346, 7
        %v1348 = vsub.s32 %v404, %v1347
        %v1349 = vrot.slane %v1288, %v1348
        %v1350 = vsel %vm409, %v1349, %v1345
        %v1351 = vlaneseq
        %v1352 = vshrl.u32 %v1351, 7
        %v1353 = vsub.s32 %v385, %v1352
        %v1354 = vrot.slane %v1291, %v1353
        %v1355 = vlaneseq
        %v1356 = vshrl.u32 %v1355, 7
        %v1357 = vsub.s32 %v390, %v1356
        %v1358 = vrot.slane %v1294, %v1357
        %v1359 = vsel %vm395, %v1358, %v1354
        %v1360 = vlaneseq
        %v1361 = vshrl.u32 %v1360, 7
        %v1362 = vsub.s32 %v397, %v1361
        %v1363 = vrot.slane %v1297, %v1362
        %v1364 = vsel %vm402, %v1363, %v1359
        %v1365 = vlaneseq
        %v1366 = vshrl.u32 %v1365, 7
        %v1367 = vsub.s32 %v404, %v1366
        %v1368 = vrot.slane %v1300, %v1367
        %v1369 = vsel %vm409, %v1368, %v1364
        %v1370 = vlaneseq
        %v1371 = vshrl.u32 %v1370, 7
        %v1372 = vsub.s32 %v385, %v1371
        %v1373 = vrot.slane %v1303, %v1372
        %v1374 = vlaneseq
        %v1375 = vshrl.u32 %v1374, 7
        %v1376 = vsub.s32 %v390, %v1375
        %v1377 = vrot.slane %v1306, %v1376
        %v1378 = vsel %vm395, %v1377, %v1373
        %v1379 = vlaneseq
        %v1380 = vshrl.u32 %v1379, 7
        %v1381 = vsub.s32 %v397, %v1380
        %v1382 = vrot.slane %v1309, %v1381
        %v1383 = vsel %vm402, %v1382, %v1378
        %v1384 = vlaneseq
        %v1385 = vshrl.u32 %v1384, 7
        %v1386 = vsub.s32 %v404, %v1385
        %v1387 = vrot.slane %v1312, %v1386
        %v1388 = vsel %vm409, %v1387, %v1383
        %v1389 = vsel %vm468, %v1350, %v1331
        %v1390 = vsel %vm470, %v1369, %v1389
        %v1391 = vsel %vm472, %v1388, %v1390
        %v1392 = vsel %vm474, %v1391, 0
        %v1395 = vsel %vm474, %v314, 0
        %v1398 = vsel %vm474, %v315, 0
        %v1401 = vsel %vm474, %v316, 0
        %v1404 = vsel %vm474, %v317, 0
        %1406 = vmatprep.subr.mxu0 0.0
        %1407 = vmatpush1.xpose.msra.mxu0 0.0
        %1408 = vmatprep.subr.mxu0 0.0
        %1409 = vmatpush1.xpose.msra.mxu0 0.0
        %1410 = vmatprep.subr.mxu0 0.0
        %1411 = vmatpush1.xpose.msra.mxu0 0.0
        %1412 = vmatprep.subr.mxu0 0.0
        %1413 = vmatpush1.xpose.msra.mxu0 0.0
        %1414 = vmatprep.subr.mxu0 0.0
        %1415 = vmatpush1.xpose.msra.mxu0 0.0
        %1416 = vmatprep.subr.mxu0 0.0
        %1417 = vmatpush1.xpose.msra.mxu0 0.0
        %1418 = vmatprep.subr.mxu0 0.0
        %1419 = vmatpush1.xpose.msra.mxu0 0.0
        %1420 = vmatprep.subr.mxu0 0.0
        %1421 = vmatpush1.xpose.msra.mxu0 0.0
        %1422 = vmatprep.subr.mxu0 0.0
        %1423 = vmatpush1.xpose.msra.mxu0 0.0
        %1424 = vmatprep.subr.mxu0 0.0
        %1425 = vmatpush1.xpose.msra.mxu0 0.0
        %1426 = vmatprep.subr.mxu0 0.0
        %1427 = vmatpush1.xpose.msra.mxu0 0.0
        %1428 = vmatprep.subr.mxu0 0.0
        %1429 = vmatpush1.xpose.msra.mxu0 0.0
        %1430 = vmatprep.subr.mxu0 0.0
        %1431 = vmatpush1.xpose.msra.mxu0 %v1404
        %1432 = vmatprep.subr.mxu0 0.0
        %1433 = vmatpush1.xpose.msra.mxu0 %v1401
        %1434 = vmatprep.subr.mxu0 0.0
        %1435 = vmatpush1.xpose.msra.mxu0 %v1398
        %1436 = vmatprep.subr.mxu0 0.0
        %1437 = vmatpush1.xpose.msra.mxu0 %v1395
        %1438 = vmatprep.subr.mxu0 0.0
        %1439 = vmatpush2.xpose.msra.mxu0 0.0
        %1440 = vmatprep.subr.mxu0 0.0
        %1441 = vmatpush2.xpose.msra.mxu0 0.0
        %1442 = vmatprep.subr.mxu0 0.0
        %1443 = vmatpush2.xpose.msra.mxu0 0.0
        %1444 = vmatprep.subr.mxu0 0.0
        %1445 = vmatpush2.xpose.msra.mxu0 0.0
        %1446 = vmatprep.subr.mxu0 0.0
        %1447 = vmatpush2.xpose.msra.mxu0 0.0
        %1448 = vmatprep.subr.mxu0 0.0
        %1449 = vmatpush2.xpose.msra.mxu0 0.0
        %1450 = vmatprep.subr.mxu0 0.0
        %1451 = vmatpush2.xpose.msra.mxu0 0.0
        %1452 = vmatprep.subr.mxu0 0.0
        %1453 = vmatpush2.xpose.msra.mxu0 0.0
        %1454 = vmatprep.subr.mxu0 0.0
        %1455 = vmatpush2.xpose.msra.mxu0 0.0
        %1456 = vmatprep.subr.mxu0 0.0
        %1457 = vmatpush2.xpose.msra.mxu0 0.0
        %1458 = vmatprep.subr.mxu0 0.0
        %1459 = vmatpush2.xpose.msra.mxu0 0.0
        %1460 = vmatprep.subr.mxu0 0.0
        %1461 = vmatpush2.xpose.msra.mxu0 0.0
        %1462 = vmatprep.subr.mxu0 0.0
        %1463 = vmatpush2.xpose.msra.mxu0 0.0
        %1464 = vmatprep.subr.mxu0 0.0
        %1465 = vmatpush2.xpose.msra.mxu0 0.0
        %1466 = vmatprep.subr.mxu0 0.0
        %1467 = vmatpush2.xpose.msra.mxu0 0.0
        %1468 = vmatprep.subr.mxu0 0.0
        %1469 = vmatpush2.xpose.msra.mxu0 0.0
        %1470 = vmatprep.mubr.f32.mxu0 0.0
        %1471 = vmatmul.mubr.f32.gmra.mxu0 %v1392
        %v1472 = vpop.f32.mrf.mxu0
        %v1473 = vadd.f32 %v1247, %v1472
        %v1474 = vpop.f32.mrf.mxu0
        %1475 = vdwg.mxu0
        %v1476 = vxor.u32 %v1473, 2147483648
        %v1477 = vmul.f32 %v1476, 1.442695
        %v1478 = vpow.pop %v1477
        %v1479 = vadd.f32 %v1478, 1.0
        %v1480 = vrcp.pop %v1479
        %v1481 = vmul.f32 1.0, %v1480
        %v1482 = vmul.f32 %v1024, %v1481
        %v1483 = vlaneseq
        %v1484 = vshrl.u32 %v1483, 7
        %v1485 = vsub.s32 0, %v1484
        %v1486 = vrot.slane %v1482, %v1485
        %1488 = vbcast.lane.b32.xlu0 %v1486, 256
        %v1489 = vpop.permute.xlu0 %1488
        %s1491 = sor.u32 256, 8
        %1492 = vbcast.lane.b32.xlu0 %v1486, %s1491
        %v1493 = vpop.permute.xlu0 %1492
        %s1495 = sor.u32 256, 16
        %1496 = vbcast.lane.b32.xlu0 %v1486, %s1495
        %v1497 = vpop.permute.xlu0 %1496
        %s1499 = sor.u32 256, 24
        %1500 = vbcast.lane.b32.xlu0 %v1486, %s1499
        %v1501 = vpop.permute.xlu0 %1500
        %v1502 = vlaneseq
        %v1503 = vshrl.u32 %v1502, 7
        %v1504 = vsub.s32 1, %v1503
        %v1505 = vrot.slane %v1482, %v1504
        %1507 = vbcast.lane.b32.xlu0 %v1505, 256
        %v1508 = vpop.permute.xlu0 %1507
        %s1510 = sor.u32 256, 8
        %1511 = vbcast.lane.b32.xlu0 %v1505, %s1510
        %v1512 = vpop.permute.xlu0 %1511
        %s1514 = sor.u32 256, 16
        %1515 = vbcast.lane.b32.xlu0 %v1505, %s1514
        %v1516 = vpop.permute.xlu0 %1515
        %s1518 = sor.u32 256, 24
        %1519 = vbcast.lane.b32.xlu0 %v1505, %s1518
        %v1520 = vpop.permute.xlu0 %1519
        %v1521 = vlaneseq
        %v1522 = vshrl.u32 %v1521, 7
        %v1523 = vsub.s32 2, %v1522
        %v1524 = vrot.slane %v1482, %v1523
        %1526 = vbcast.lane.b32.xlu0 %v1524, 256
        %v1527 = vpop.permute.xlu0 %1526
        %s1529 = sor.u32 256, 8
        %1530 = vbcast.lane.b32.xlu0 %v1524, %s1529
        %v1531 = vpop.permute.xlu0 %1530
        %s1533 = sor.u32 256, 16
        %1534 = vbcast.lane.b32.xlu0 %v1524, %s1533
        %v1535 = vpop.permute.xlu0 %1534
        %s1537 = sor.u32 256, 24
        %1538 = vbcast.lane.b32.xlu0 %v1524, %s1537
        %v1539 = vpop.permute.xlu0 %1538
        %v1540 = vlaneseq
        %v1541 = vshrl.u32 %v1540, 7
        %v1542 = vsub.s32 3, %v1541
        %v1543 = vrot.slane %v1482, %v1542
        %1545 = vbcast.lane.b32.xlu0 %v1543, 256
        %v1546 = vpop.permute.xlu0 %1545
        %s1548 = sor.u32 256, 8
        %1549 = vbcast.lane.b32.xlu0 %v1543, %s1548
        %v1550 = vpop.permute.xlu0 %1549
        %s1552 = sor.u32 256, 16
        %1553 = vbcast.lane.b32.xlu0 %v1543, %s1552
        %v1554 = vpop.permute.xlu0 %1553
        %s1556 = sor.u32 256, 24
        %1557 = vbcast.lane.b32.xlu0 %v1543, %s1556
        %v1558 = vpop.permute.xlu0 %1557
        %v1559 = vmul.f32 %v635, %v1489
        %v1560 = vmul.f32 %v636, %v1493
        %v1561 = vmul.f32 %v637, %v1497
        %v1562 = vmul.f32 %v638, %v1501
        %v1563 = vmul.f32 %v639, %v1508
        %v1564 = vmul.f32 %v640, %v1512
        %v1565 = vmul.f32 %v641, %v1516
        %v1566 = vmul.f32 %v642, %v1520
        %v1567 = vmul.f32 %v643, %v1527
        %v1568 = vmul.f32 %v644, %v1531
        %v1569 = vmul.f32 %v645, %v1535
        %v1570 = vmul.f32 %v646, %v1539
        %v1571 = vmul.f32 %v647, %v1546
        %v1572 = vmul.f32 %v648, %v1550
        %v1573 = vmul.f32 %v649, %v1554
        %v1574 = vmul.f32 %v650, %v1558
        %1575 = vst [vmem:[%s287] sm:$0xff] %v1559
        %1576 = vst [vmem:[%s287 + $0x8] sm:$0xff] %v1560
        %1577 = vst [vmem:[%s287 + $0x10] sm:$0xff] %v1561
        %1578 = vst [vmem:[%s287 + $0x18] sm:$0xff] %v1562
        %1579 = vst [vmem:[%s287 + $0x20] sm:$0xff] %v1563
        %1580 = vst [vmem:[%s287 + $0x28] sm:$0xff] %v1564
        %1581 = vst [vmem:[%s287 + $0x30] sm:$0xff] %v1565
        %1582 = vst [vmem:[%s287 + $0x38] sm:$0xff] %v1566
        %1583 = vst [vmem:[%s287 + $0x40] sm:$0xff] %v1567
        %1584 = vst [vmem:[%s287 + $0x48] sm:$0xff] %v1568
        %1585 = vst [vmem:[%s287 + $0x50] sm:$0xff] %v1569
        %1586 = vst [vmem:[%s287 + $0x58] sm:$0xff] %v1570
        %1587 = vst [vmem:[%s287 + $0x60] sm:$0xff] %v1571
        %1588 = vst [vmem:[%s287 + $0x68] sm:$0xff] %v1572
        %1589 = vst [vmem:[%s287 + $0x70] sm:$0xff] %v1573
        %1590 = vst [vmem:[%s287 + $0x78] sm:$0xff] %v1574
        %s1591 = sand.u32 %s142, 1
        %s1592 = scalar_lea.sflag [#allocation4], %s1591
        %s1593 = sand.u32 %s142, 1
        %s1594 = smul.addr %s1593, 128
        %s1595 = scalar_lea.vmem [#allocation10], %s1594
        // Predicated region
        $region57: #{tpu_custom_call.1} parent=39 // pred_check
          %p1596 = pneg %p152
        $region58: #{tpu_custom_call.1} parent=39 // pred_check_branch
          %1598 = sbr.rel (%p1596) target = $region60
        $region59: #{tpu_custom_call.1} parent=39 // pred_region
          %s1599 = smul.u32 4, %s24
          %s1601 = ssub.s32 2048, 2048
          %1602 = vsyncadd %s1592, %s1601
          %s1603 = smul.addr %s1599, 4
          %s1604 = smul.addr %s1603, 128
          %s1605 = scalar_lea.hbm %s5, %s1604
          %s1606 = sshll.u32 %s1595, 4
          %s1607 = int_to_ptr.vmem [resolvable:$true] %s1606
          %1612 = dma.vmem_to_hbm [thread:$0]  %s1607, 2048, %s1605, %s1592, 128, 128, 8
        $region60: #{tpu_custom_call.1} parent=39 // pred_fallthru
          _
      $region40: #{tpu_custom_call.1} parent=5 // pred_fallthru
        _
      %p1613 = scmp.le.s32.totalorder 2, %s19
      // Predicated region
      $region61: #{tpu_custom_call.1} parent=5 // pred_check
        %p1614 = pneg %p1613
      $region62: #{tpu_custom_call.1} parent=5 // pred_check_branch
        %1616 = sbr.rel (%p1614) target = $region64
      $region63: #{tpu_custom_call.1} parent=5 // pred_region
        %s1617 = ssub.s32 %s19, 2
        // Predicated region
        $region65: #{tpu_custom_call.1} parent=63 // pred_check
          %p1618 = pneg %p158
        $region66: #{tpu_custom_call.1} parent=63 // pred_check_branch
          %1620 = sbr.rel (%p1618) target = $region68
        $region67: #{tpu_custom_call.1} parent=63 // pred_region
          %s1621 = sand.u32 %s143, 1
          %s1622 = scalar_lea.sflag [#allocation4], %s1621
          %s1623 = sand.u32 %s143, 1
          %s1624 = smul.addr %s1623, 128
          %s1625 = scalar_lea.vmem [#allocation10], %s1624
          %1626 = dma.done %s1622, 2048
        $region68: #{tpu_custom_call.1} parent=63 // pred_fallthru
          _
      $region64: #{tpu_custom_call.1} parent=5 // pred_fallthru
        _
    $region6: #{tpu_custom_call.1} parent=1 // loop_footer
      %s23 = sadd.s32 1, %s19
    $region7: #{tpu_custom_call.1} parent=1 // loop_footer_branch
      %18 = sbr.rel target = $region3
    $region8: #{tpu_custom_call.1} parent=1 // loop_exit
      _
    %1627 = vsyncpa [#allocation3], 1
    %s1628 = scalar_lea.sflag [#allocation3], 1
    %1629 = vsyncpa %s1628, 1
    %1630 = vsyncpa [#allocation6], 1
    %1631 = vsyncpa [#allocation9], 1
    %1632 = vsyncpa [#allocation4], 1
    %s1633 = scalar_lea.sflag [#allocation4], 1
    %1634 = vsyncpa %s1633, 1

</llo_original>
